<compile_context>
chip_gen: v7x
topology: tpu7x:2x2x1
jax: 0.10.0
libtpu: 0.0.40
codegen_flags: <defaults>
</compile_context>

<pallas_src>
import jax
import jax.numpy as jnp
import numpy as np
from jax.experimental import pallas as pl
from jax.experimental.pallas import tpu as pltpu


_NEG_BIG = -1e30  # finite "-inf": keeps fully-masked / padded positions NaN-free


def _round_up(n, m):
    return ((n + m - 1) // m) * m


def _vmem_limit_bytes():
    """Generation-specific scoped-VMEM limit.

    v5e/v6e (128 MiB physical VMEM) -> 96 MiB; v7x (64 MiB per TensorCore)
    -> 48 MiB.  Falls back to the v7x number if the query fails.
    """
    cap = 64 * 1024 * 1024
    try:
        info = pltpu.get_tpu_info()
        c = getattr(info, "vmem_capacity_bytes", None)
        if c:
            cap = int(c)
    except Exception:
        pass
    return int(min((3 * cap) // 4, 96 * 1024 * 1024))


def _pick_blocks(B, S, D, x_isize, o_isize, has_mask, budget):
    """Pick (nb, ts): batch rows and sequence columns per grid step.

    Accounts for the double-buffered x / mask / out streams *and* for
    possibly-unfused f32 (nb, ts, D) temporaries (x*w, p*x), which the
    previous version under-counted.
    """

    def step_bytes(nb, ts):
        b = 2 * nb * ts * D * x_isize          # x block, double-buffered
        b += 2 * nb * ts * D * 4               # f32 temporaries if Mosaic doesn't fuse
        if has_mask:
            b += 2 * nb * ts * 4               # lane-dense (nb, ts) mask block
        b += 2 * nb * D * o_isize              # output block
        b += nb * (2 * 128 + D) * 4            # (m, l, acc) scratch
        return b

    mult = 16 if (o_isize == 2 and B >= 16) else 8   # bf16 out: pack sublanes by 16
    nb0 = B if B < mult else mult

    # Sequence chunk: whole sequence if it fits; otherwise a multiple of 128
    # (keeps the (nb, ts) mask block lane-aligned and the x block legal).
    ts = S
    while step_bytes(nb0, ts) > budget and ts > 128:
        ts = max(128, ((ts // 2) // 128) * 128)

    # Grow the batch block to fill the budget (amortize ~0.35 us/grid-step).
    nb = max(nb0, (int(budget // max(1, step_bytes(1, ts))) // mult) * mult)
    if B >= 2 * mult:
        # Guarantee >= 2 steps on the parallel axis so both v7x TensorCores
        # get work (no effect on v5e/v6e beyond a still-large block).
        nb = min(nb, _round_up(pl.cdiv(B, 2), mult))
    if nb >= B:
        nb = B          # single exact block: no out-of-bounds rows at all
    return int(nb), int(ts)


def _make_kernel(S, ts, num_s_chunks, has_mask):
    ragged_s = (S % ts) != 0

    def kernel(*refs):
        if has_mask:
            x_ref, w_ref, mk_ref, o_ref, m_scr, l_scr, acc_scr = refs
        else:
            x_ref, w_ref, o_ref, m_scr, l_scr, acc_scr = refs
        j = pl.program_id(1)

        @pl.when(j == 0)
        def _():
            m_scr[...] = jnp.full_like(m_scr, -jnp.inf)
            l_scr[...] = jnp.zeros_like(l_scr)
            acc_scr[...] = jnp.zeros_like(acc_scr)

        x = x_ref[...].astype(jnp.float32)              # (nb, ts, D)
        w = w_ref[...]                                  # (1, 1, D) f32

        if ragged_s:
            # Last sequence chunk overhangs S: zero the stale columns so any
            # NaN/Inf garbage cannot reach the weighted sum.
            limit = S - j * ts
            col3 = jax.lax.broadcasted_iota(jnp.int32, (x.shape[0], ts, 1), 1)
            x = jnp.where(col3 < limit, x, 0.0)

        # Linear(D -> 1) without bias: softmax is shift invariant, so the bias
        # cancels exactly (masked positions stay masked).
        s = jnp.sum(x * w, axis=-1)                     # (nb, ts) lane-dense scores

        if has_mask:
            # masked_fill(mask == 0, -inf) with a finite sentinel, computed
            # in-kernel on the lane-dense (nb, ts) mask block.
            s = jnp.where(mk_ref[...] == 0, _NEG_BIG, s)
        if ragged_s:
            col2 = jax.lax.broadcasted_iota(jnp.int32, s.shape, 1)
            s = jnp.where(col2 < (S - j * ts), s, _NEG_BIG)

        # Online-softmax accumulation across sequence chunks.
        m_prev = m_scr[...]                                           # (nb, 1)
        m_new = jnp.maximum(m_prev, jnp.max(s, axis=-1, keepdims=True))
        alpha = jnp.exp(m_prev - m_new)                               # (nb, 1)
        p = jnp.exp(s - m_new)                                        # (nb, ts)
        l_scr[...] = alpha * l_scr[...] + jnp.sum(p, axis=-1, keepdims=True)
        acc_scr[...] = alpha * acc_scr[...] + jnp.sum(p[:, :, None] * x, axis=1)
        m_scr[...] = m_new

        @pl.when(j == num_s_chunks - 1)
        def _():
            # Exact divide: the denominator has only nb values, so the approx
            # EUP reciprocal saves nothing measurable.
            o_ref[...] = (acc_scr[...] / l_scr[...]).astype(o_ref.dtype)

    return kernel


def mask_attention(inputs, weight, bias=None, mask=None, *,
                   block_b=None, block_s=None):
    """Pallas TPU forward for MaskAttention.

    inputs: (B, S, D); weight: (D, 1) or (1, D) (torch Linear(D, 1) weight);
    bias: accepted for API parity but unused (softmax shift invariance);
    mask: (B, S) or None -- positions where mask == 0 receive zero attention.
    block_b / block_s: optional block-size overrides (testing / tuning).
    """
    del bias  # softmax(s + b) == softmax(s): a uniform bias is a no-op here.
    inputs = jnp.asarray(inputs)
    B, S, D = inputs.shape
    has_mask = mask is not None

    vmem_limit = _vmem_limit_bytes()
    nb, ts = _pick_blocks(B, S, D, inputs.dtype.itemsize, inputs.dtype.itemsize,
                          has_mask, (3 * vmem_limit) // 4)
    if block_b is not None:
        nb = int(block_b)
    if block_s is not None:
        ts = int(block_s)
    num_b_blocks = pl.cdiv(B, nb)
    num_s_chunks = pl.cdiv(S, ts)

    w_row = jnp.asarray(weight).reshape(1, 1, D).astype(jnp.float32)

    x_spec = pl.BlockSpec((nb, ts, D), lambda i, j: (i, j, 0))
    w_spec = pl.BlockSpec((1, 1, D), lambda i, j: (0, 0, 0))
    o_spec = pl.BlockSpec((nb, D), lambda i, j: (i, 0))
    scratch = [pltpu.VMEM((nb, 1), jnp.float32),   # running max   m
               pltpu.VMEM((nb, 1), jnp.float32),   # running denom l
               pltpu.VMEM((nb, D), jnp.float32)]   # running weighted sum

    in_specs = [x_spec, w_spec]
    args = [inputs, w_row]
    if has_mask:
        mask_arr = jnp.asarray(mask).reshape(B, S)
        if mask_arr.dtype != jnp.float32 and mask_arr.dtype != jnp.int32:
            mask_arr = mask_arr.astype(jnp.float32)
        in_specs.append(pl.BlockSpec((nb, ts), lambda i, j: (i, j)))
        args.append(mask_arr)

    kernel = _make_kernel(S, ts, num_s_chunks, has_mask)
    return pl.pallas_call(
        kernel,
        out_shape=jax.ShapeDtypeStruct((B, D), inputs.dtype),
        grid_spec=pltpu.PrefetchScalarGridSpec(
            num_scalar_prefetch=0,
            grid=(num_b_blocks, num_s_chunks),
            in_specs=in_specs,
            out_specs=o_spec,
            scratch_shapes=scratch),
        compiler_params=pltpu.CompilerParams(
            dimension_semantics=("parallel", "arbitrary"),
            vmem_limit_bytes=vmem_limit),
    )(*args)


def _reference(inputs, weight, bias, mask=None):
    # Pure-JAX reference with exact f32 elementwise math (avoids TPU einsum
    # default-precision noise).
    scores = jnp.sum(inputs * weight.reshape(1, 1, -1), axis=-1) + bias.reshape(())
    if mask is not None:
        scores = jnp.where(mask == 0, -jnp.inf, scores)
    p = jax.nn.softmax(scores, axis=-1)
    return jnp.sum(p[..., None] * inputs, axis=1)


if __name__ == "__main__":
    key = jax.random.PRNGKey(0)
    k_x, k_w, k_b, k_m, k_x2, k_w2, k_b2, k_m2 = jax.random.split(key, 8)

    # ---- small default-shape test (single block, masked + unmasked paths) ----
    B, S, D = 2, 8, 32
    x = jax.random.normal(k_x, (B, S, D), dtype=jnp.float32)
    bound = 1.0 / np.sqrt(D)
    w = jax.random.uniform(k_w, (D, 1), minval=-bound, maxval=bound, dtype=jnp.float32)
    b = jax.random.uniform(k_b, (1, 1), minval=-bound, maxval=bound, dtype=jnp.float32)
    m = (jax.random.uniform(k_m, (B, S)) > 0.3).astype(jnp.float32)
    m = m.at[:, 0].set(1.0)  # at least one valid position per row

    out = jax.block_until_ready(mask_attention(x, w, b, m))
    np.testing.assert_allclose(np.asarray(out), np.asarray(_reference(x, w, b, m)),
                               rtol=1e-4, atol=1e-5)

    out_nm = jax.block_until_ready(mask_attention(x, w, b, None))
    np.testing.assert_allclose(np.asarray(out_nm), np.asarray(_reference(x, w, b, None)),
                               rtol=1e-4, atol=1e-5)

    # ---- multi-block test: ragged batch edge block (no wrapper pad) +
    #      S-chunked online softmax with a ragged last sequence chunk ----
    B2, S2, D2 = 11, 160, 64
    x2 = jax.random.normal(k_x2, (B2, S2, D2), dtype=jnp.float32)
    bound2 = 1.0 / np.sqrt(D2)
    w2 = jax.random.uniform(k_w2, (D2, 1), minval=-bound2, maxval=bound2, dtype=jnp.float32)
    b2 = jax.random.uniform(k_b2, (1, 1), minval=-bound2, maxval=bound2, dtype=jnp.float32)
    m2 = (jax.random.uniform(k_m2, (B2, S2)) > 0.3).astype(jnp.float32)
    m2 = m2.at[:, 0].set(1.0)

    out2 = jax.block_until_ready(mask_attention(x2, w2, b2, m2, block_b=8, block_s=128))
    np.testing.assert_allclose(np.asarray(out2), np.asarray(_reference(x2, w2, b2, m2)),
                               rtol=1e-4, atol=1e-5)

    out2_nm = jax.block_until_ready(mask_attention(x2, w2, b2, None, block_b=8, block_s=128))
    np.testing.assert_allclose(np.asarray(out2_nm), np.asarray(_reference(x2, w2, b2, None)),
                               rtol=1e-4, atol=1e-5)

    print("KERNEL_OK")
</pallas_src>

<mosaic_0001>
module attributes {stable_mosaic.version = 11 : i64} {
  func.func @kernel(%arg0: i32, %arg1: i32, %arg2: memref<2x8x32xf32, #tpu.memory_space<vmem>>, %arg3: memref<1x1x32xf32, #tpu.memory_space<vmem>>, %arg4: memref<2x8xf32, #tpu.memory_space<vmem>>, %arg5: memref<2x32xf32, #tpu.memory_space<vmem>>, %arg6: memref<2x1xf32, #tpu.memory_space<vmem>>, %arg7: memref<2x1xf32, #tpu.memory_space<vmem>>, %arg8: memref<2x32xf32, #tpu.memory_space<vmem>>) attributes {dimension_semantics = [#tpu.dimension_semantics<parallel>, #tpu.dimension_semantics<arbitrary>], iteration_bounds = array<i64: 1, 1>, scalar_prefetch = 0 : i64, scratch_operands = 3 : i64, tpu.core_type = #tpu.core_type<tc>, window_params = [{transform_indices = @transform_0, window_bounds = array<i64: 2, 8, 32>}, {pipeline_mode = #tpu.pipeline_mode<synchronous>, transform_indices = @transform_1, window_bounds = array<i64: 1, 1, 32>}, {transform_indices = @transform_2, window_bounds = array<i64: 2, 8>}, {transform_indices = @transform_3, window_bounds = array<i64: 2, 32>}]} {
    %c0_i32 = arith.constant 0 : i32
    %0 = arith.cmpi eq, %arg1, %c0_i32 : i32
    %1 = arith.extui %0 : i1 to i32
    %c0_i32_0 = arith.constant 0 : i32
    %2 = arith.cmpi ne, %1, %c0_i32_0 : i32
    scf.if %2 {
      %cst_27 = arith.constant 0xFF800000 : f32
      %41 = vector.broadcast %cst_27 : f32 to vector<2x1xf32>
      %c0_28 = arith.constant 0 : index
      %c0_29 = arith.constant 0 : index
      %42 = vector.load %arg6[%c0_28, %c0_29] : memref<2x1xf32, #tpu.memory_space<vmem>>, vector<2x1xf32>
      tpu.vector_store %arg6[%c0_28, %c0_29], %41 {strides = array<i32>} : memref<2x1xf32, #tpu.memory_space<vmem>>, vector<2x1xf32>,
      %cst_30 = arith.constant 0.000000e+00 : f32
      %43 = vector.broadcast %cst_30 : f32 to vector<2x1xf32>
      %c0_31 = arith.constant 0 : index
      %c0_32 = arith.constant 0 : index
      %44 = vector.load %arg7[%c0_31, %c0_32] : memref<2x1xf32, #tpu.memory_space<vmem>>, vector<2x1xf32>
      tpu.vector_store %arg7[%c0_31, %c0_32], %43 {strides = array<i32>} : memref<2x1xf32, #tpu.memory_space<vmem>>, vector<2x1xf32>,
      %cst_33 = arith.constant 0.000000e+00 : f32
      %45 = vector.broadcast %cst_33 : f32 to vector<2x32xf32>
      %c0_34 = arith.constant 0 : index
      %c0_35 = arith.constant 0 : index
      %46 = vector.load %arg8[%c0_34, %c0_35] : memref<2x32xf32, #tpu.memory_space<vmem>>, vector<2x32xf32>
      tpu.vector_store %arg8[%c0_34, %c0_35], %45 {strides = array<i32>} : memref<2x32xf32, #tpu.memory_space<vmem>>, vector<2x32xf32>,
    } else {
    }
    %c0 = arith.constant 0 : index
    %c0_1 = arith.constant 0 : index
    %c0_2 = arith.constant 0 : index
    %3 = vector.load %arg2[%c0, %c0_1, %c0_2] : memref<2x8x32xf32, #tpu.memory_space<vmem>>, vector<2x8x32xf32>
    %c0_3 = arith.constant 0 : index
    %c0_4 = arith.constant 0 : index
    %c0_5 = arith.constant 0 : index
    %4 = vector.load %arg3[%c0_3, %c0_4, %c0_5] : memref<1x1x32xf32, #tpu.memory_space<vmem>>, vector<1x1x32xf32>
    %5 = vector.broadcast %4 : vector<1x1x32xf32> to vector<2x8x32xf32>
    %6 = arith.mulf %3, %5 : vector<2x8x32xf32>
    %cst = arith.constant dense<0.000000e+00> : vector<2x8xf32>
    %7 = vector.multi_reduction <add>, %6, %cst [2] : vector<2x8x32xf32> to vector<2x8xf32>
    %c0_6 = arith.constant 0 : index
    %c0_7 = arith.constant 0 : index
    %8 = vector.load %arg4[%c0_6, %c0_7] : memref<2x8xf32, #tpu.memory_space<vmem>>, vector<2x8xf32>
    %cst_8 = arith.constant 0.000000e+00 : f32
    %9 = vector.broadcast %cst_8 : f32 to vector<2x8xf32>
    %10 = arith.cmpf oeq, %8, %9 : vector<2x8xf32>
    %cst_9 = arith.constant -1.000000e+30 : f32
    %11 = vector.broadcast %cst_9 : f32 to vector<2x8xf32>
    %12 = arith.select %10, %11, %7 : vector<2x8xi1>, vector<2x8xf32>
    %c0_10 = arith.constant 0 : index
    %c0_11 = arith.constant 0 : index
    %13 = vector.load %arg6[%c0_10, %c0_11] : memref<2x1xf32, #tpu.memory_space<vmem>>, vector<2x1xf32>
    %cst_12 = arith.constant dense<0xFF800000> : vector<2xf32>
    %14 = vector.multi_reduction <maximumf>, %12, %cst_12 [1] : vector<2x8xf32> to vector<2xf32>
    %15 = vector.shape_cast %14 : vector<2xf32> to vector<2x1xf32>
    %16 = arith.maximumf %13, %15 : vector<2x1xf32>
    %17 = arith.subf %13, %16 : vector<2x1xf32>
    %18 = math.exp %17 : vector<2x1xf32>
    %19 = vector.broadcast %16 : vector<2x1xf32> to vector<2x8xf32>
    %20 = arith.subf %12, %19 : vector<2x8xf32>
    %21 = math.exp %20 : vector<2x8xf32>
    %c0_13 = arith.constant 0 : index
    %c0_14 = arith.constant 0 : index
    %22 = vector.load %arg7[%c0_13, %c0_14] : memref<2x1xf32, #tpu.memory_space<vmem>>, vector<2x1xf32>
    %23 = arith.mulf %18, %22 : vector<2x1xf32>
    %cst_15 = arith.constant dense<0.000000e+00> : vector<2xf32>
    %24 = vector.multi_reduction <add>, %21, %cst_15 [1] : vector<2x8xf32> to vector<2xf32>
    %25 = vector.shape_cast %24 : vector<2xf32> to vector<2x1xf32>
    %26 = arith.addf %23, %25 : vector<2x1xf32>
    %c0_16 = arith.constant 0 : index
    %c0_17 = arith.constant 0 : index
    %27 = vector.load %arg7[%c0_16, %c0_17] : memref<2x1xf32, #tpu.memory_space<vmem>>, vector<2x1xf32>
    tpu.vector_store %arg7[%c0_16, %c0_17], %26 {strides = array<i32>} : memref<2x1xf32, #tpu.memory_space<vmem>>, vector<2x1xf32>,
    %c0_18 = arith.constant 0 : index
    %c0_19 = arith.constant 0 : index
    %28 = vector.load %arg8[%c0_18, %c0_19] : memref<2x32xf32, #tpu.memory_space<vmem>>, vector<2x32xf32>
    %29 = vector.broadcast %18 : vector<2x1xf32> to vector<2x32xf32>
    %30 = arith.mulf %29, %28 : vector<2x32xf32>
    %31 = vector.shape_cast %21 : vector<2x8xf32> to vector<2x8x1xf32>
    %32 = vector.broadcast %31 : vector<2x8x1xf32> to vector<2x8x32xf32>
    %33 = arith.mulf %32, %3 : vector<2x8x32xf32>
    %cst_20 = arith.constant dense<0.000000e+00> : vector<2x32xf32>
    %34 = vector.multi_reduction <add>, %33, %cst_20 [1] : vector<2x8x32xf32> to vector<2x32xf32>
    %35 = arith.addf %30, %34 : vector<2x32xf32>
    %c0_21 = arith.constant 0 : index
    %c0_22 = arith.constant 0 : index
    %36 = vector.load %arg8[%c0_21, %c0_22] : memref<2x32xf32, #tpu.memory_space<vmem>>, vector<2x32xf32>
    tpu.vector_store %arg8[%c0_21, %c0_22], %35 {strides = array<i32>} : memref<2x32xf32, #tpu.memory_space<vmem>>, vector<2x32xf32>,
    %c0_23 = arith.constant 0 : index
    %c0_24 = arith.constant 0 : index
    %37 = vector.load %arg6[%c0_23, %c0_24] : memref<2x1xf32, #tpu.memory_space<vmem>>, vector<2x1xf32>
    tpu.vector_store %arg6[%c0_23, %c0_24], %16 {strides = array<i32>} : memref<2x1xf32, #tpu.memory_space<vmem>>, vector<2x1xf32>,
    %c0_i32_25 = arith.constant 0 : i32
    %38 = arith.cmpi eq, %arg1, %c0_i32_25 : i32
    %39 = arith.extui %38 : i1 to i32
    %c0_i32_26 = arith.constant 0 : i32
    %40 = arith.cmpi ne, %39, %c0_i32_26 : i32
    scf.if %40 {
      %c0_27 = arith.constant 0 : index
      %c0_28 = arith.constant 0 : index
      %41 = vector.load %arg8[%c0_27, %c0_28] : memref<2x32xf32, #tpu.memory_space<vmem>>, vector<2x32xf32>
      %c0_29 = arith.constant 0 : index
      %c0_30 = arith.constant 0 : index
      %42 = vector.load %arg7[%c0_29, %c0_30] : memref<2x1xf32, #tpu.memory_space<vmem>>, vector<2x1xf32>
      %43 = vector.broadcast %42 : vector<2x1xf32> to vector<2x32xf32>
      %44 = arith.divf %41, %43 : vector<2x32xf32>
      %c0_31 = arith.constant 0 : index
      %c0_32 = arith.constant 0 : index
      %45 = vector.load %arg5[%c0_31, %c0_32] : memref<2x32xf32, #tpu.memory_space<vmem>>, vector<2x32xf32>
      tpu.vector_store %arg5[%c0_31, %c0_32], %44 {strides = array<i32>} : memref<2x32xf32, #tpu.memory_space<vmem>>, vector<2x32xf32>,
    } else {
    }
    return
  }
  func.func @transform_0(%arg0: i32, %arg1: i32) -> (i32, i32, i32) {
    %c0_i32 = arith.constant 0 : i32
    %c0_i32_0 = arith.constant 0 : i32
    return %arg0, %arg1, %c0_i32 : i32, i32, i32
  }
  func.func @transform_1(%arg0: i32, %arg1: i32) -> (i32, i32, i32) {
    %c0_i32 = arith.constant 0 : i32
    %c0_i32_0 = arith.constant 0 : i32
    %c0_i32_1 = arith.constant 0 : i32
    %c0_i32_2 = arith.constant 0 : i32
    return %c0_i32, %c0_i32_0, %c0_i32_1 : i32, i32, i32
  }
  func.func @transform_2(%arg0: i32, %arg1: i32) -> (i32, i32) {
    %c0_i32 = arith.constant 0 : i32
    return %arg0, %arg1 : i32, i32
  }
  func.func @transform_3(%arg0: i32, %arg1: i32) -> (i32, i32) {
    %c0_i32 = arith.constant 0 : i32
    %c0_i32_0 = arith.constant 0 : i32
    return %arg0, %c0_i32 : i32, i32
  }
}

</mosaic_0001>

<llo_original>
// kernel: tpu_custom_call.1
$region0: #{tpu_custom_call.1}
  #allocation0 [shape = 'u32[]', space=smem, size = 0x4, offset = 0x4, fixed_abs, tag = 'smem constant byte address 0x4 - core index']
  #allocation1 [shape = 'u32[144,128]{1,0:T(1,128)}', space=vmem, size = 0x12000, scoped, tag = 'internal scratch']
  #allocation2 [shape = 'f32[2,1]{1,0:T(2,128)}', space=vmem, size = 0x400, scoped, tag = 'scratch operand']
  #allocation3 [shape = 'f32[2,1]{1,0:T(2,128)}', space=vmem, size = 0x400, scoped, tag = 'scratch operand']
  #allocation4 [shape = 'f32[2,32]{1,0:T(2,128)}', space=vmem, size = 0x400, scoped, tag = 'scratch operand']
  %s0 = inlined_call_operand.hbm [shape: f32[2,8,32], index: 0, kind: input, shape index: {}]
  %s1 = inlined_call_operand.vmem [shape: f32[1,1,32], index: 1, kind: input, shape index: {}]
  %s2 = inlined_call_operand.vmem [shape: f32[2,8], index: 2, kind: input, shape index: {}]
  %s3 = inlined_call_operand.hbm [shape: f32[2,32], index: 3, kind: output, shape index: {}]
  %s4 = sld [smem:[#allocation0]]
  $region34: #{tpu_custom_call.1} parent=0
    _
  %s6 = ssub.s32 1, %s4
  %s7 = scalar_select 0, %s6, %s4
  $region1: #{tpu_custom_call.1} parent=0
    #allocation5 [shape = 'u8[8192]{0}', space=vmem, size = 0x2000, scoped, tag = 'input window, operand 0, single buffered']
    #allocation6 [shape = 's32[1]{0}', space=sflag, size = 0x4, scoped, tag = 'scoped memory for tpu_custom_call.1']
    #allocation7 [shape = 's32[1]{0}', space=sflag, size = 0x4, scoped, tag = 'scoped memory for tpu_custom_call.1']
    #allocation8 [shape = 'u8[1024]{0}', space=vmem, size = 0x400, scoped, tag = 'output window, operand 0, single buffered']
    %8 = vsyncpa [#allocation6], 0
    %9 = vsyncpa [#allocation7], 0
    // Predicated region
    $region2: #{tpu_custom_call.1} parent=1 // pred_check
      _
    $region3: #{tpu_custom_call.1} parent=1 // pred_check_branch
      %11 = sbr.rel (0) target = $region5
    $region4: #{tpu_custom_call.1} parent=1 // pred_region
      %s13 = ssub.s32 256, 256
      %14 = vsyncadd [#allocation6], %s13
      %s15 = sshll.u32 [#allocation5], 4
      %s16 = int_to_ptr.vmem [resolvable:$true] %s15
      %21 = dma.hbm_to_vmem [thread:$0]  %s0, 256, %s16, [#allocation6], 128, 128, 8
    $region5: #{tpu_custom_call.1} parent=1 // pred_fallthru
      _
    // Predicated region
    $region6: #{tpu_custom_call.1} parent=1 // pred_check
      _
    $region7: #{tpu_custom_call.1} parent=1 // pred_check_branch
      %23 = sbr.rel (0) target = $region9
    $region8: #{tpu_custom_call.1} parent=1 // pred_region
      _
    $region9: #{tpu_custom_call.1} parent=1 // pred_fallthru
      _
    // Predicated region
    $region10: #{tpu_custom_call.1} parent=1 // pred_check
      _
    $region11: #{tpu_custom_call.1} parent=1 // pred_check_branch
      %25 = sbr.rel (0) target = $region13
    $region12: #{tpu_custom_call.1} parent=1 // pred_region
      _
    $region13: #{tpu_custom_call.1} parent=1 // pred_fallthru
      _
    // Predicated region
    $region14: #{tpu_custom_call.1} parent=1 // pred_check
      _
    $region15: #{tpu_custom_call.1} parent=1 // pred_check_branch
      %27 = sbr.rel (0) target = $region17
    $region16: #{tpu_custom_call.1} parent=1 // pred_region
      %28 = dma.done [#allocation6], 256
    $region17: #{tpu_custom_call.1} parent=1 // pred_fallthru
      _
    %p29 = scmp.eq.s32.totalorder 0, 0
    // Predicated region
    $region18: #{tpu_custom_call.1} parent=1 // pred_check
      %p30 = pneg %p29
    $region19: #{tpu_custom_call.1} parent=1 // pred_check_branch
      %32 = sbr.rel (%p30) target = $region21
    $region20: #{tpu_custom_call.1} parent=1 // pred_region
      %vm33 = vcmask 1024
      %34 = vst.msk [vmem:[#allocation2] sm:$0x3] %vm33, -inf
      %35 = vst.msk [vmem:[#allocation3] sm:$0x3] %vm33, 0.0
      %vm36 = vcmask 254976
      %37 = vst.msk [vmem:[#allocation4] sm:$0x3] %vm36, 0.0
    $region21: #{tpu_custom_call.1} parent=1 // pred_fallthru
      _
    %v38 = vld [vmem:[#allocation5] sm:$0xff]
    %v39 = vld [vmem:[#allocation5 + $0x8] sm:$0xff]
    %v40 = vld [vmem:[%s1] sm:$0x1]
    %v42 = vlaneseq
    %v43 = vshrl.u32 %v42, 7
    %v44 = vsub.s32 0, %v43
    %v45 = vrot.slane %v40, %v44
    %v47 = vmul.f32 %v38, %v45
    %v48 = vmul.f32 %v39, %v45
    %vm49 = vcmask 261120
    %v50 = vsel %vm49, %v47, 0.0
    %51 = vadd.xlane.f32.xlu0 %v50
    %v52 = vpop.xlane.xlu0 %51
    %v53 = vsel %vm49, %v48, 0.0
    %54 = vadd.xlane.f32.xlu0 %v53
    %v55 = vpop.xlane.xlu0 %54
    %v56 = vld [vmem:[%s2] sm:$0x3]
    %vm57 = vcmp.eq.f32.partialorder %v56, 0.0
    %v60 = vlaneseq
    %v61 = vand.u32 %v60, 127
    %v62 = vlaneseq
    %v63 = vshrl.u32 %v62, 7
    %v64 = vsub.s32 %v61, %v63
    %v65 = vrot.slane %v52, %v64
    %v66 = vlaneseq
    %v67 = vshrl.u32 %v66, 7
    %v68 = vsub.s32 %v61, %v67
    %v69 = vrot.slane %v55, %v68
    %vm70 = vcmask 1041409
    %v71 = vsel %vm70, %v69, %v65
    %v73 = vsel %vm57, -1e+30, %v71
    %v74 = vld [vmem:[#allocation2] sm:$0x3]
    %vm75 = vcmask 58368
    %v76 = vsel %vm75, %v73, -inf
    %77 = vmax.xlane.f32.xlu0 %v76
    %v78 = vpop.xlane.xlu0 %77
    %v79 = vmax.f32 %v74, %v78
    %v80 = vsub.f32 %v74, %v79
    %v81 = vmul.f32 %v80, 1.442695
    %v82 = vpow.pop %v81
    %84 = vset.pattern.permute.xlu0 0
    %85 = vperm.xlu0 %84, %v79
    %v86 = vpop.permute.xlu0 %85
    %v88 = vsub.f32 %v73, %v86
    %v89 = vmul.f32 %v88, 1.442695
    %v90 = vpow.pop %v89
    %v91 = vld [vmem:[#allocation3] sm:$0x3]
    %v92 = vmul.f32 %v82, %v91
    %v93 = vsel %vm75, %v90, 0.0
    %94 = vadd.xlane.f32.xlu0 %v93
    %v95 = vpop.xlane.xlu0 %94
    %v96 = vadd.f32 %v92, %v95
    %vm97 = vcmask 1024
    %98 = vst.msk [vmem:[#allocation3] sm:$0x3] %vm97, %v96
    %v99 = vld [vmem:[#allocation4] sm:$0x3]
    %101 = vset.pattern.permute.xlu0 0
    %102 = vperm.xlu0 %101, %v82
    %v103 = vpop.permute.xlu0 %102
    %v105 = vmul.f32 %v103, %v99
    %v106 = vlaneseq
    %v107 = vshrl.u32 %v106, 7
    %v108 = vsub.s32 0, %v107
    %v109 = vrot.slane %v90, %v108
    %111 = vbcast.lane.b32.xlu0 %v109, 256
    %v112 = vpop.permute.xlu0 %111
    %v113 = vlaneseq
    %v114 = vshrl.u32 %v113, 7
    %v115 = vsub.s32 1, %v114
    %v116 = vrot.slane %v90, %v115
    %118 = vbcast.lane.b32.xlu0 %v116, 256
    %v119 = vpop.permute.xlu0 %118
    %v120 = vmul.f32 %v112, %v38
    %v121 = vmul.f32 %v119, %v39
    %v122 = vsel %vm49, %v120, 0.0
    %v123 = vrot.slane %v122, 4
    %v124 = vadd.f32 %v122, %v123
    %v125 = vrot.slane %v124, 2
    %v126 = vadd.f32 %v124, %v125
    %v127 = vrot.slane %v126, 1
    %v128 = vadd.f32 %v126, %v127
    %v129 = vsel %vm49, %v121, 0.0
    %v130 = vrot.slane %v129, 4
    %v131 = vadd.f32 %v129, %v130
    %v132 = vrot.slane %v131, 2
    %v133 = vadd.f32 %v131, %v132
    %v134 = vrot.slane %v133, 1
    %v135 = vadd.f32 %v133, %v134
    %v138 = vsel %vm70, %v135, %v128
    %v140 = vadd.f32 %v105, %v138
    %vm141 = vcmask 254976
    %142 = vst.msk [vmem:[#allocation4] sm:$0x3] %vm141, %v140
    %143 = vst.msk [vmem:[#allocation2] sm:$0x3] %vm97, %v79
    // Predicated region
    $region22: #{tpu_custom_call.1} parent=1 // pred_check
      %p144 = pneg %p29
    $region23: #{tpu_custom_call.1} parent=1 // pred_check_branch
      %146 = sbr.rel (%p144) target = $region25
    $region24: #{tpu_custom_call.1} parent=1 // pred_region
      %v147 = vld [vmem:[#allocation4] sm:$0x3]
      %v148 = vld [vmem:[#allocation3] sm:$0x3]
      %150 = vset.pattern.permute.xlu0 0
      %151 = vperm.xlu0 %150, %v148
      %v152 = vpop.permute.xlu0 %151
      %v154 = vrcp.pop %v152
      %v155 = vmul.f32 %v147, %v154
      %156 = vst.msk [vmem:[#allocation8] sm:$0x3] %vm141, %v155
    $region25: #{tpu_custom_call.1} parent=1 // pred_fallthru
      _
    // Predicated region
    $region26: #{tpu_custom_call.1} parent=1 // pred_check
      _
    $region27: #{tpu_custom_call.1} parent=1 // pred_check_branch
      %158 = sbr.rel (0) target = $region29
    $region28: #{tpu_custom_call.1} parent=1 // pred_region
      %s160 = ssub.s32 32, 32
      %161 = vsyncadd [#allocation7], %s160
      %s163 = sshll.u32 [#allocation8], 4
      %s164 = int_to_ptr.vmem [resolvable:$true] %s163
      %166 = dma.vmem_to_hbm [thread:$0]  %s164, 32, %s3, [#allocation7]
    $region29: #{tpu_custom_call.1} parent=1 // pred_fallthru
      _
    // Predicated region
    $region30: #{tpu_custom_call.1} parent=1 // pred_check
      _
    $region31: #{tpu_custom_call.1} parent=1 // pred_check_branch
      %168 = sbr.rel (0) target = $region33
    $region32: #{tpu_custom_call.1} parent=1 // pred_region
      %169 = dma.done [#allocation7], 32
    $region33: #{tpu_custom_call.1} parent=1 // pred_fallthru
      _
    %170 = vsyncpa [#allocation6], 1
    %171 = vsyncpa [#allocation7], 1

</llo_original>
